<compile_context>
chip_gen: v7x
topology: tpu7x:2x2x1
jax: 0.10.0
libtpu: 0.0.40
codegen_flags: <defaults>
</compile_context>

<pallas_src>
import functools

import jax
import jax.numpy as jnp
from jax import lax
from jax.experimental import pallas as pl
from jax.experimental.pallas import tpu as pltpu

THRESHOLD = 1.0
HIDDEN = 128
OUT = 10
OUT_PAD = 128          # lane-dense padding of the 10-wide output layer
_UNROLL_LIMIT = 32     # fully unroll the time loops up to this many steps


def snn_kernel(x_ref, w1_ref, b1_ref, w2_ref, b2_ref, o_ref, spk1_ref,
               *, beta, time_steps):
    """One batch tile of the SNN forward (two matmuls + LIF dynamics).

    x_ref:    (Bt, D)           input data tile (identical at every time step)
    w1_ref:   (D, 128)          first linear weight,  b1_ref: (1, 128)
    w2_ref:   (128, OUT_PAD)    second linear weight (lane-padded), b2_ref: (1, OUT_PAD)
    o_ref:    (T, Bt, OUT_PAD)  stacked output spikes (lane-padded)
    spk1_ref: (T*Bt, 128)       VMEM scratch: layer-1 spikes, then layer-2 currents.
    """
    batch = x_ref.shape[0]  # Bt, multiple of 8 (wrapper guarantees)

    # Layer-1 projection: `data` is the same at every step -> loop-invariant,
    # one MXU matmul.
    h1 = jnp.dot(x_ref[...], w1_ref[...],
                 preferred_element_type=jnp.float32) + b1_ref[...]

    # ---- LIF #1 recurrence (pure VPU), membranes carried as values ----------
    # utils.reset(self.net): membranes start at zero.
    if time_steps <= _UNROLL_LIMIT:
        mem1 = jnp.zeros_like(h1)
        for t in range(time_steps):
            mem1 = beta * mem1 + h1 - jnp.where(mem1 > THRESHOLD, THRESHOLD, 0.0)
            spk1_ref[t * batch:(t + 1) * batch, :] = (
                mem1 > THRESHOLD).astype(jnp.float32)
    else:
        def body1(t, mem1):
            mem1 = beta * mem1 + h1 - jnp.where(mem1 > THRESHOLD, THRESHOLD, 0.0)
            row = pl.multiple_of(t * batch, 8)
            spk1_ref[pl.ds(row, batch), :] = (mem1 > THRESHOLD).astype(jnp.float32)
            return mem1
        lax.fori_loop(0, time_steps, body1, jnp.zeros_like(h1), unroll=4)

    # ---- Layer 2: ONE batched (T*Bt,128)@(128,OUT_PAD) MXU matmul -----------
    # Result written back into the same scratch (shapes match) so the unrolled
    # LIF#2 loop only keeps ~1 live vreg tile per step instead of T*Bt rows.
    spk1_ref[...] = jnp.dot(spk1_ref[...], w2_ref[...],
                            preferred_element_type=jnp.float32) + b2_ref[...]

    # ---- LIF #2 recurrence over precomputed currents -------------------------
    if time_steps <= _UNROLL_LIMIT:
        mem2 = jnp.zeros((batch, OUT_PAD), jnp.float32)
        for t in range(time_steps):
            cur2 = spk1_ref[t * batch:(t + 1) * batch, :]
            mem2 = beta * mem2 + cur2 - jnp.where(mem2 > THRESHOLD, THRESHOLD, 0.0)
            o_ref[t] = (mem2 > THRESHOLD).astype(jnp.float32)
    else:
        def body2(t, mem2):
            row = pl.multiple_of(t * batch, 8)
            cur2 = spk1_ref[pl.ds(row, batch), :]
            mem2 = beta * mem2 + cur2 - jnp.where(mem2 > THRESHOLD, THRESHOLD, 0.0)
            o_ref[t] = (mem2 > THRESHOLD).astype(jnp.float32)
            return mem2
        lax.fori_loop(0, time_steps, body2,
                      jnp.zeros((batch, OUT_PAD), jnp.float32), unroll=4)


def pad_output_layer(w2, b2):
    """Lane-pad the 10-wide output layer to 128 (done ONCE at init).

    Padded columns get zero weight and zero bias, so their membranes stay at 0
    and never spike; the wrapper slices them off.
    """
    w2p = jnp.zeros((HIDDEN, OUT_PAD), jnp.float32).at[:, :OUT].set(w2)
    b2p = jnp.zeros((1, OUT_PAD), jnp.float32).at[:, :OUT].set(b2)
    return w2p, b2p


@functools.partial(jax.jit, static_argnames=("time_steps", "beta"))
def snn_forward(data, w1, b1, w2p, b2p, *, time_steps, beta):
    batch, input_dim = data.shape

    # Pad batch to a sublane multiple so every per-step store is full-vreg,
    # then pick a batch tile (multiple of 8, at most 128 rows per grid step).
    pb = ((batch + 7) // 8) * 8
    if pb <= 128:
        bt = pb
    else:
        bt = 128
        pb = ((batch + 127) // 128) * 128
    data_p = jnp.pad(data, ((0, pb - batch), (0, 0)))

    kernel = functools.partial(snn_kernel, beta=float(beta),
                               time_steps=int(time_steps))

    # Explicit VMEM budget (scratch + double-buffered output tile + weights).
    vmem_bytes = 4 * (time_steps * bt * HIDDEN                 # spk1 scratch
                      + 2 * time_steps * bt * OUT_PAD          # o double-buffer
                      + 2 * bt * input_dim                     # x double-buffer
                      + 2 * (input_dim * HIDDEN + HIDDEN
                             + HIDDEN * OUT_PAD + OUT_PAD))    # weights/biases
    cparams = dict(dimension_semantics=("parallel",))
    if vmem_bytes > 24 * 1024 * 1024:
        # Leave headroom but never exceed v7x physical VMEM (64 MiB / core).
        cparams["vmem_limit_bytes"] = min(int(vmem_bytes * 1.25), 60 * 1024 * 1024)

    out = pl.pallas_call(
        kernel,
        out_shape=jax.ShapeDtypeStruct((time_steps, pb, OUT_PAD), jnp.float32),
        grid=(pb // bt,),
        in_specs=[
            pl.BlockSpec((bt, input_dim), lambda i: (i, 0)),      # data tile
            pl.BlockSpec((input_dim, HIDDEN), lambda i: (0, 0)),  # w1 (whole)
            pl.BlockSpec((1, HIDDEN), lambda i: (0, 0)),          # b1
            pl.BlockSpec((HIDDEN, OUT_PAD), lambda i: (0, 0)),    # w2 (padded)
            pl.BlockSpec((1, OUT_PAD), lambda i: (0, 0)),         # b2 (padded)
        ],
        out_specs=pl.BlockSpec((time_steps, bt, OUT_PAD), lambda i: (0, i, 0)),
        scratch_shapes=[
            # layer-1 spikes, then reused for the layer-2 currents
            pltpu.VMEM((time_steps * bt, HIDDEN), jnp.float32),
        ],
        compiler_params=pltpu.CompilerParams(**cparams),
    )(data_p, w1, b1, w2p, b2p)

    # TODO(synk): spike_grad (surrogate gradient) only affects backward; the
    # forward Heaviside is implemented exactly.
    return out[:, :batch, :OUT]


def snn_reference(data, w1, b1, w2, b2, *, time_steps, beta):
    """Pure-JAX reference mirroring the PyTorch/snntorch forward."""
    h1 = data @ w1 + b1
    mem1 = jnp.zeros((data.shape[0], HIDDEN), jnp.float32)
    mem2 = jnp.zeros((data.shape[0], OUT), jnp.float32)
    outs = []
    for _ in range(time_steps):
        reset1 = (mem1 > THRESHOLD).astype(jnp.float32)
        mem1 = beta * mem1 + h1 - reset1 * THRESHOLD
        spk1 = (mem1 > THRESHOLD).astype(jnp.float32)
        cur2 = spk1 @ w2 + b2
        reset2 = (mem2 > THRESHOLD).astype(jnp.float32)
        mem2 = beta * mem2 + cur2 - reset2 * THRESHOLD
        outs.append((mem2 > THRESHOLD).astype(jnp.float32))
    return jnp.stack(outs)


def init_linear(key, fan_in, fan_out):
    """PyTorch nn.Linear default init: U(-1/sqrt(fan_in), 1/sqrt(fan_in))."""
    kw, kb = jax.random.split(key)
    bound = 1.0 / jnp.sqrt(fan_in)
    w = jax.random.uniform(kw, (fan_in, fan_out), jnp.float32, -bound, bound)
    b = jax.random.uniform(kb, (1, fan_out), jnp.float32, -bound, bound)
    return w, b


if __name__ == "__main__":
    # Small, deterministic configuration.
    batch = 8
    input_dim = 64
    time_steps = 8
    beta = 0.9

    key = jax.random.PRNGKey(0)
    k_x, k_l1, k_l2 = jax.random.split(key, 3)

    data = jax.random.normal(k_x, (batch, input_dim), jnp.float32)
    w1, b1 = init_linear(k_l1, input_dim, HIDDEN)
    w2, b2 = init_linear(k_l2, HIDDEN, OUT)

    # Hoisted once at init (not per call).
    w2p, b2p = pad_output_layer(w2, b2)

    spk_rec = snn_forward(data, w1, b1, w2p, b2p,
                          time_steps=time_steps, beta=beta)
    spk_rec = jax.block_until_ready(spk_rec)

    # Sanity checks: shape/dtype match torch.stack(spk_rec), spikes are binary.
    assert spk_rec.shape == (time_steps, batch, OUT), spk_rec.shape
    assert spk_rec.dtype == jnp.float32
    assert bool(jnp.all((spk_rec == 0.0) | (spk_rec == 1.0)))

    # Numerical check vs pure-JAX reference (tolerant: a near-threshold
    # membrane could in principle flip under different f32 summation order).
    ref = snn_reference(data, w1, b1, w2, b2, time_steps=time_steps, beta=beta)
    mismatch = float(jnp.mean(jnp.abs(spk_rec - ref)))
    assert mismatch <= 0.02, f"spike mismatch fraction {mismatch}"

    print("KERNEL_OK")
</pallas_src>

<mosaic_0001>
module attributes {stable_mosaic.version = 11 : i64} {
  func.func @snn_kernel(%arg0: i32, %arg1: memref<8x64xf32, #tpu.memory_space<vmem>>, %arg2: memref<64x128xf32, #tpu.memory_space<vmem>>, %arg3: memref<1x128xf32, #tpu.memory_space<vmem>>, %arg4: memref<128x128xf32, #tpu.memory_space<vmem>>, %arg5: memref<1x128xf32, #tpu.memory_space<vmem>>, %arg6: memref<8x8x128xf32, #tpu.memory_space<vmem>>, %arg7: memref<64x128xf32, #tpu.memory_space<vmem>>) attributes {dimension_semantics = [#tpu.dimension_semantics<parallel>], iteration_bounds = array<i64: 1>, scalar_prefetch = 0 : i64, scratch_operands = 1 : i64, tpu.core_type = #tpu.core_type<tc>, window_params = [{transform_indices = @transform_0, window_bounds = array<i64: 8, 64>}, {pipeline_mode = #tpu.pipeline_mode<synchronous>, transform_indices = @transform_1, window_bounds = array<i64: 64, 128>}, {pipeline_mode = #tpu.pipeline_mode<synchronous>, transform_indices = @transform_2, window_bounds = array<i64: 1, 128>}, {pipeline_mode = #tpu.pipeline_mode<synchronous>, transform_indices = @transform_3, window_bounds = array<i64: 128, 128>}, {pipeline_mode = #tpu.pipeline_mode<synchronous>, transform_indices = @transform_4, window_bounds = array<i64: 1, 128>}, {transform_indices = @transform_5, window_bounds = array<i64: 8, 8, 128>}]} {
    %c0 = arith.constant 0 : index
    %c0_0 = arith.constant 0 : index
    %0 = vector.load %arg1[%c0, %c0_0] : memref<8x64xf32, #tpu.memory_space<vmem>>, vector<8x64xf32>
    %c0_1 = arith.constant 0 : index
    %c0_2 = arith.constant 0 : index
    %1 = vector.load %arg2[%c0_1, %c0_2] : memref<64x128xf32, #tpu.memory_space<vmem>>, vector<64x128xf32>
    %cst = arith.constant dense<0.000000e+00> : vector<8x128xf32>
    %2 = tpu.matmul %0, %1, %cst {dimension_numbers = #tpu.dot_dimension_numbers<[1], [0], [0], [1], [0, 0, 1, 1], [], []>} : vector<8x64xf32>, vector<64x128xf32>, vector<8x128xf32> -> vector<8x128xf32>
    %c0_3 = arith.constant 0 : index
    %c0_4 = arith.constant 0 : index
    %3 = vector.load %arg3[%c0_3, %c0_4] : memref<1x128xf32, #tpu.memory_space<vmem>>, vector<1x128xf32>
    %4 = vector.broadcast %3 : vector<1x128xf32> to vector<8x128xf32>
    %5 = arith.addf %2, %4 : vector<8x128xf32>
    %cst_5 = arith.constant 0.000000e+00 : f32
    %6 = vector.broadcast %cst_5 : f32 to vector<8x128xf32>
    %cst_6 = arith.constant 0.899999976 : f32
    %7 = vector.broadcast %cst_6 : f32 to vector<8x128xf32>
    %8 = arith.mulf %7, %6 : vector<8x128xf32>
    %9 = arith.addf %8, %5 : vector<8x128xf32>
    %cst_7 = arith.constant 1.000000e+00 : f32
    %10 = vector.broadcast %cst_7 : f32 to vector<8x128xf32>
    %11 = arith.cmpf ogt, %6, %10 : vector<8x128xf32>
    %cst_8 = arith.constant 1.000000e+00 : f32
    %cst_9 = arith.constant 0.000000e+00 : f32
    %12 = vector.broadcast %cst_8 : f32 to vector<8x128xf32>
    %13 = vector.broadcast %cst_9 : f32 to vector<8x128xf32>
    %14 = arith.select %11, %12, %13 : vector<8x128xi1>, vector<8x128xf32>
    %15 = arith.subf %9, %14 : vector<8x128xf32>
    %cst_10 = arith.constant 1.000000e+00 : f32
    %16 = vector.broadcast %cst_10 : f32 to vector<8x128xf32>
    %17 = arith.cmpf ogt, %15, %16 : vector<8x128xf32>
    %18 = arith.extui %17 : vector<8x128xi1> to vector<8x128xi32>
    %19 = arith.sitofp %18 : vector<8x128xi32> to vector<8x128xf32>
    %c0_11 = arith.constant 0 : index
    %c0_12 = arith.constant 0 : index
    %20 = vector.load %arg7[%c0_11, %c0_12] : memref<64x128xf32, #tpu.memory_space<vmem>>, vector<8x128xf32>
    tpu.vector_store %arg7[%c0_11, %c0_12], %19 {strides = array<i32>} : memref<64x128xf32, #tpu.memory_space<vmem>>, vector<8x128xf32>,
    %cst_13 = arith.constant 0.899999976 : f32
    %21 = vector.broadcast %cst_13 : f32 to vector<8x128xf32>
    %22 = arith.mulf %21, %15 : vector<8x128xf32>
    %23 = arith.addf %22, %5 : vector<8x128xf32>
    %cst_14 = arith.constant 1.000000e+00 : f32
    %24 = vector.broadcast %cst_14 : f32 to vector<8x128xf32>
    %25 = arith.cmpf ogt, %15, %24 : vector<8x128xf32>
    %cst_15 = arith.constant 1.000000e+00 : f32
    %cst_16 = arith.constant 0.000000e+00 : f32
    %26 = vector.broadcast %cst_15 : f32 to vector<8x128xf32>
    %27 = vector.broadcast %cst_16 : f32 to vector<8x128xf32>
    %28 = arith.select %25, %26, %27 : vector<8x128xi1>, vector<8x128xf32>
    %29 = arith.subf %23, %28 : vector<8x128xf32>
    %cst_17 = arith.constant 1.000000e+00 : f32
    %30 = vector.broadcast %cst_17 : f32 to vector<8x128xf32>
    %31 = arith.cmpf ogt, %29, %30 : vector<8x128xf32>
    %32 = arith.extui %31 : vector<8x128xi1> to vector<8x128xi32>
    %33 = arith.sitofp %32 : vector<8x128xi32> to vector<8x128xf32>
    %c8 = arith.constant 8 : index
    %c0_18 = arith.constant 0 : index
    %34 = vector.load %arg7[%c8, %c0_18] : memref<64x128xf32, #tpu.memory_space<vmem>>, vector<8x128xf32>
    tpu.vector_store %arg7[%c8, %c0_18], %33 {strides = array<i32>} : memref<64x128xf32, #tpu.memory_space<vmem>>, vector<8x128xf32>,
    %cst_19 = arith.constant 0.899999976 : f32
    %35 = vector.broadcast %cst_19 : f32 to vector<8x128xf32>
    %36 = arith.mulf %35, %29 : vector<8x128xf32>
    %37 = arith.addf %36, %5 : vector<8x128xf32>
    %cst_20 = arith.constant 1.000000e+00 : f32
    %38 = vector.broadcast %cst_20 : f32 to vector<8x128xf32>
    %39 = arith.cmpf ogt, %29, %38 : vector<8x128xf32>
    %cst_21 = arith.constant 1.000000e+00 : f32
    %cst_22 = arith.constant 0.000000e+00 : f32
    %40 = vector.broadcast %cst_21 : f32 to vector<8x128xf32>
    %41 = vector.broadcast %cst_22 : f32 to vector<8x128xf32>
    %42 = arith.select %39, %40, %41 : vector<8x128xi1>, vector<8x128xf32>
    %43 = arith.subf %37, %42 : vector<8x128xf32>
    %cst_23 = arith.constant 1.000000e+00 : f32
    %44 = vector.broadcast %cst_23 : f32 to vector<8x128xf32>
    %45 = arith.cmpf ogt, %43, %44 : vector<8x128xf32>
    %46 = arith.extui %45 : vector<8x128xi1> to vector<8x128xi32>
    %47 = arith.sitofp %46 : vector<8x128xi32> to vector<8x128xf32>
    %c16 = arith.constant 16 : index
    %c0_24 = arith.constant 0 : index
    %48 = vector.load %arg7[%c16, %c0_24] : memref<64x128xf32, #tpu.memory_space<vmem>>, vector<8x128xf32>
    tpu.vector_store %arg7[%c16, %c0_24], %47 {strides = array<i32>} : memref<64x128xf32, #tpu.memory_space<vmem>>, vector<8x128xf32>,
    %cst_25 = arith.constant 0.899999976 : f32
    %49 = vector.broadcast %cst_25 : f32 to vector<8x128xf32>
    %50 = arith.mulf %49, %43 : vector<8x128xf32>
    %51 = arith.addf %50, %5 : vector<8x128xf32>
    %cst_26 = arith.constant 1.000000e+00 : f32
    %52 = vector.broadcast %cst_26 : f32 to vector<8x128xf32>
    %53 = arith.cmpf ogt, %43, %52 : vector<8x128xf32>
    %cst_27 = arith.constant 1.000000e+00 : f32
    %cst_28 = arith.constant 0.000000e+00 : f32
    %54 = vector.broadcast %cst_27 : f32 to vector<8x128xf32>
    %55 = vector.broadcast %cst_28 : f32 to vector<8x128xf32>
    %56 = arith.select %53, %54, %55 : vector<8x128xi1>, vector<8x128xf32>
    %57 = arith.subf %51, %56 : vector<8x128xf32>
    %cst_29 = arith.constant 1.000000e+00 : f32
    %58 = vector.broadcast %cst_29 : f32 to vector<8x128xf32>
    %59 = arith.cmpf ogt, %57, %58 : vector<8x128xf32>
    %60 = arith.extui %59 : vector<8x128xi1> to vector<8x128xi32>
    %61 = arith.sitofp %60 : vector<8x128xi32> to vector<8x128xf32>
    %c24 = arith.constant 24 : index
    %c0_30 = arith.constant 0 : index
    %62 = vector.load %arg7[%c24, %c0_30] : memref<64x128xf32, #tpu.memory_space<vmem>>, vector<8x128xf32>
    tpu.vector_store %arg7[%c24, %c0_30], %61 {strides = array<i32>} : memref<64x128xf32, #tpu.memory_space<vmem>>, vector<8x128xf32>,
    %cst_31 = arith.constant 0.899999976 : f32
    %63 = vector.broadcast %cst_31 : f32 to vector<8x128xf32>
    %64 = arith.mulf %63, %57 : vector<8x128xf32>
    %65 = arith.addf %64, %5 : vector<8x128xf32>
    %cst_32 = arith.constant 1.000000e+00 : f32
    %66 = vector.broadcast %cst_32 : f32 to vector<8x128xf32>
    %67 = arith.cmpf ogt, %57, %66 : vector<8x128xf32>
    %cst_33 = arith.constant 1.000000e+00 : f32
    %cst_34 = arith.constant 0.000000e+00 : f32
    %68 = vector.broadcast %cst_33 : f32 to vector<8x128xf32>
    %69 = vector.broadcast %cst_34 : f32 to vector<8x128xf32>
    %70 = arith.select %67, %68, %69 : vector<8x128xi1>, vector<8x128xf32>
    %71 = arith.subf %65, %70 : vector<8x128xf32>
    %cst_35 = arith.constant 1.000000e+00 : f32
    %72 = vector.broadcast %cst_35 : f32 to vector<8x128xf32>
    %73 = arith.cmpf ogt, %71, %72 : vector<8x128xf32>
    %74 = arith.extui %73 : vector<8x128xi1> to vector<8x128xi32>
    %75 = arith.sitofp %74 : vector<8x128xi32> to vector<8x128xf32>
    %c32 = arith.constant 32 : index
    %c0_36 = arith.constant 0 : index
    %76 = vector.load %arg7[%c32, %c0_36] : memref<64x128xf32, #tpu.memory_space<vmem>>, vector<8x128xf32>
    tpu.vector_store %arg7[%c32, %c0_36], %75 {strides = array<i32>} : memref<64x128xf32, #tpu.memory_space<vmem>>, vector<8x128xf32>,
    %cst_37 = arith.constant 0.899999976 : f32
    %77 = vector.broadcast %cst_37 : f32 to vector<8x128xf32>
    %78 = arith.mulf %77, %71 : vector<8x128xf32>
    %79 = arith.addf %78, %5 : vector<8x128xf32>
    %cst_38 = arith.constant 1.000000e+00 : f32
    %80 = vector.broadcast %cst_38 : f32 to vector<8x128xf32>
    %81 = arith.cmpf ogt, %71, %80 : vector<8x128xf32>
    %cst_39 = arith.constant 1.000000e+00 : f32
    %cst_40 = arith.constant 0.000000e+00 : f32
    %82 = vector.broadcast %cst_39 : f32 to vector<8x128xf32>
    %83 = vector.broadcast %cst_40 : f32 to vector<8x128xf32>
    %84 = arith.select %81, %82, %83 : vector<8x128xi1>, vector<8x128xf32>
    %85 = arith.subf %79, %84 : vector<8x128xf32>
    %cst_41 = arith.constant 1.000000e+00 : f32
    %86 = vector.broadcast %cst_41 : f32 to vector<8x128xf32>
    %87 = arith.cmpf ogt, %85, %86 : vector<8x128xf32>
    %88 = arith.extui %87 : vector<8x128xi1> to vector<8x128xi32>
    %89 = arith.sitofp %88 : vector<8x128xi32> to vector<8x128xf32>
    %c40 = arith.constant 40 : index
    %c0_42 = arith.constant 0 : index
    %90 = vector.load %arg7[%c40, %c0_42] : memref<64x128xf32, #tpu.memory_space<vmem>>, vector<8x128xf32>
    tpu.vector_store %arg7[%c40, %c0_42], %89 {strides = array<i32>} : memref<64x128xf32, #tpu.memory_space<vmem>>, vector<8x128xf32>,
    %cst_43 = arith.constant 0.899999976 : f32
    %91 = vector.broadcast %cst_43 : f32 to vector<8x128xf32>
    %92 = arith.mulf %91, %85 : vector<8x128xf32>
    %93 = arith.addf %92, %5 : vector<8x128xf32>
    %cst_44 = arith.constant 1.000000e+00 : f32
    %94 = vector.broadcast %cst_44 : f32 to vector<8x128xf32>
    %95 = arith.cmpf ogt, %85, %94 : vector<8x128xf32>
    %cst_45 = arith.constant 1.000000e+00 : f32
    %cst_46 = arith.constant 0.000000e+00 : f32
    %96 = vector.broadcast %cst_45 : f32 to vector<8x128xf32>
    %97 = vector.broadcast %cst_46 : f32 to vector<8x128xf32>
    %98 = arith.select %95, %96, %97 : vector<8x128xi1>, vector<8x128xf32>
    %99 = arith.subf %93, %98 : vector<8x128xf32>
    %cst_47 = arith.constant 1.000000e+00 : f32
    %100 = vector.broadcast %cst_47 : f32 to vector<8x128xf32>
    %101 = arith.cmpf ogt, %99, %100 : vector<8x128xf32>
    %102 = arith.extui %101 : vector<8x128xi1> to vector<8x128xi32>
    %103 = arith.sitofp %102 : vector<8x128xi32> to vector<8x128xf32>
    %c48 = arith.constant 48 : index
    %c0_48 = arith.constant 0 : index
    %104 = vector.load %arg7[%c48, %c0_48] : memref<64x128xf32, #tpu.memory_space<vmem>>, vector<8x128xf32>
    tpu.vector_store %arg7[%c48, %c0_48], %103 {strides = array<i32>} : memref<64x128xf32, #tpu.memory_space<vmem>>, vector<8x128xf32>,
    %cst_49 = arith.constant 0.899999976 : f32
    %105 = vector.broadcast %cst_49 : f32 to vector<8x128xf32>
    %106 = arith.mulf %105, %99 : vector<8x128xf32>
    %107 = arith.addf %106, %5 : vector<8x128xf32>
    %cst_50 = arith.constant 1.000000e+00 : f32
    %108 = vector.broadcast %cst_50 : f32 to vector<8x128xf32>
    %109 = arith.cmpf ogt, %99, %108 : vector<8x128xf32>
    %cst_51 = arith.constant 1.000000e+00 : f32
    %cst_52 = arith.constant 0.000000e+00 : f32
    %110 = vector.broadcast %cst_51 : f32 to vector<8x128xf32>
    %111 = vector.broadcast %cst_52 : f32 to vector<8x128xf32>
    %112 = arith.select %109, %110, %111 : vector<8x128xi1>, vector<8x128xf32>
    %113 = arith.subf %107, %112 : vector<8x128xf32>
    %cst_53 = arith.constant 1.000000e+00 : f32
    %114 = vector.broadcast %cst_53 : f32 to vector<8x128xf32>
    %115 = arith.cmpf ogt, %113, %114 : vector<8x128xf32>
    %116 = arith.extui %115 : vector<8x128xi1> to vector<8x128xi32>
    %117 = arith.sitofp %116 : vector<8x128xi32> to vector<8x128xf32>
    %c56 = arith.constant 56 : index
    %c0_54 = arith.constant 0 : index
    %118 = vector.load %arg7[%c56, %c0_54] : memref<64x128xf32, #tpu.memory_space<vmem>>, vector<8x128xf32>
    tpu.vector_store %arg7[%c56, %c0_54], %117 {strides = array<i32>} : memref<64x128xf32, #tpu.memory_space<vmem>>, vector<8x128xf32>,
    %c0_55 = arith.constant 0 : index
    %c0_56 = arith.constant 0 : index
    %119 = vector.load %arg7[%c0_55, %c0_56] : memref<64x128xf32, #tpu.memory_space<vmem>>, vector<64x128xf32>
    %c0_57 = arith.constant 0 : index
    %c0_58 = arith.constant 0 : index
    %120 = vector.load %arg4[%c0_57, %c0_58] : memref<128x128xf32, #tpu.memory_space<vmem>>, vector<128x128xf32>
    %cst_59 = arith.constant dense<0.000000e+00> : vector<64x128xf32>
    %121 = tpu.matmul %119, %120, %cst_59 {dimension_numbers = #tpu.dot_dimension_numbers<[1], [0], [0], [1], [0, 0, 1, 1], [], []>} : vector<64x128xf32>, vector<128x128xf32>, vector<64x128xf32> -> vector<64x128xf32>
    %c0_60 = arith.constant 0 : index
    %c0_61 = arith.constant 0 : index
    %122 = vector.load %arg5[%c0_60, %c0_61] : memref<1x128xf32, #tpu.memory_space<vmem>>, vector<1x128xf32>
    %123 = vector.broadcast %122 : vector<1x128xf32> to vector<64x128xf32>
    %124 = arith.addf %121, %123 : vector<64x128xf32>
    %c0_62 = arith.constant 0 : index
    %c0_63 = arith.constant 0 : index
    %125 = vector.load %arg7[%c0_62, %c0_63] : memref<64x128xf32, #tpu.memory_space<vmem>>, vector<64x128xf32>
    tpu.vector_store %arg7[%c0_62, %c0_63], %124 {strides = array<i32>} : memref<64x128xf32, #tpu.memory_space<vmem>>, vector<64x128xf32>,
    %cst_64 = arith.constant 0.000000e+00 : f32
    %126 = vector.broadcast %cst_64 : f32 to vector<8x128xf32>
    %c0_65 = arith.constant 0 : index
    %c0_66 = arith.constant 0 : index
    %127 = vector.load %arg7[%c0_65, %c0_66] : memref<64x128xf32, #tpu.memory_space<vmem>>, vector<8x128xf32>
    %cst_67 = arith.constant 0.899999976 : f32
    %128 = vector.broadcast %cst_67 : f32 to vector<8x128xf32>
    %129 = arith.mulf %128, %126 : vector<8x128xf32>
    %130 = arith.addf %129, %127 : vector<8x128xf32>
    %cst_68 = arith.constant 1.000000e+00 : f32
    %131 = vector.broadcast %cst_68 : f32 to vector<8x128xf32>
    %132 = arith.cmpf ogt, %126, %131 : vector<8x128xf32>
    %cst_69 = arith.constant 1.000000e+00 : f32
    %cst_70 = arith.constant 0.000000e+00 : f32
    %133 = vector.broadcast %cst_69 : f32 to vector<8x128xf32>
    %134 = vector.broadcast %cst_70 : f32 to vector<8x128xf32>
    %135 = arith.select %132, %133, %134 : vector<8x128xi1>, vector<8x128xf32>
    %136 = arith.subf %130, %135 : vector<8x128xf32>
    %cst_71 = arith.constant 1.000000e+00 : f32
    %137 = vector.broadcast %cst_71 : f32 to vector<8x128xf32>
    %138 = arith.cmpf ogt, %136, %137 : vector<8x128xf32>
    %139 = arith.extui %138 : vector<8x128xi1> to vector<8x128xi32>
    %140 = arith.sitofp %139 : vector<8x128xi32> to vector<8x128xf32>
    %c0_72 = arith.constant 0 : index
    %c0_73 = arith.constant 0 : index
    %c0_74 = arith.constant 0 : index
    %141 = vector.load %arg6[%c0_72, %c0_73, %c0_74] : memref<8x8x128xf32, #tpu.memory_space<vmem>>, vector<1x8x128xf32>
    %142 = vector.shape_cast %141 : vector<1x8x128xf32> to vector<8x128xf32>
    %143 = vector.shape_cast %140 : vector<8x128xf32> to vector<1x8x128xf32>
    tpu.vector_store %arg6[%c0_72, %c0_73, %c0_74], %143 {strides = array<i32>} : memref<8x8x128xf32, #tpu.memory_space<vmem>>, vector<1x8x128xf32>,
    %c8_75 = arith.constant 8 : index
    %c0_76 = arith.constant 0 : index
    %144 = vector.load %arg7[%c8_75, %c0_76] : memref<64x128xf32, #tpu.memory_space<vmem>>, vector<8x128xf32>
    %cst_77 = arith.constant 0.899999976 : f32
    %145 = vector.broadcast %cst_77 : f32 to vector<8x128xf32>
    %146 = arith.mulf %145, %136 : vector<8x128xf32>
    %147 = arith.addf %146, %144 : vector<8x128xf32>
    %cst_78 = arith.constant 1.000000e+00 : f32
    %148 = vector.broadcast %cst_78 : f32 to vector<8x128xf32>
    %149 = arith.cmpf ogt, %136, %148 : vector<8x128xf32>
    %cst_79 = arith.constant 1.000000e+00 : f32
    %cst_80 = arith.constant 0.000000e+00 : f32
    %150 = vector.broadcast %cst_79 : f32 to vector<8x128xf32>
    %151 = vector.broadcast %cst_80 : f32 to vector<8x128xf32>
    %152 = arith.select %149, %150, %151 : vector<8x128xi1>, vector<8x128xf32>
    %153 = arith.subf %147, %152 : vector<8x128xf32>
    %cst_81 = arith.constant 1.000000e+00 : f32
    %154 = vector.broadcast %cst_81 : f32 to vector<8x128xf32>
    %155 = arith.cmpf ogt, %153, %154 : vector<8x128xf32>
    %156 = arith.extui %155 : vector<8x128xi1> to vector<8x128xi32>
    %157 = arith.sitofp %156 : vector<8x128xi32> to vector<8x128xf32>
    %c1 = arith.constant 1 : index
    %c0_82 = arith.constant 0 : index
    %c0_83 = arith.constant 0 : index
    %158 = vector.load %arg6[%c1, %c0_82, %c0_83] : memref<8x8x128xf32, #tpu.memory_space<vmem>>, vector<1x8x128xf32>
    %159 = vector.shape_cast %158 : vector<1x8x128xf32> to vector<8x128xf32>
    %160 = vector.shape_cast %157 : vector<8x128xf32> to vector<1x8x128xf32>
    tpu.vector_store %arg6[%c1, %c0_82, %c0_83], %160 {strides = array<i32>} : memref<8x8x128xf32, #tpu.memory_space<vmem>>, vector<1x8x128xf32>,
    %c16_84 = arith.constant 16 : index
    %c0_85 = arith.constant 0 : index
    %161 = vector.load %arg7[%c16_84, %c0_85] : memref<64x128xf32, #tpu.memory_space<vmem>>, vector<8x128xf32>
    %cst_86 = arith.constant 0.899999976 : f32
    %162 = vector.broadcast %cst_86 : f32 to vector<8x128xf32>
    %163 = arith.mulf %162, %153 : vector<8x128xf32>
    %164 = arith.addf %163, %161 : vector<8x128xf32>
    %cst_87 = arith.constant 1.000000e+00 : f32
    %165 = vector.broadcast %cst_87 : f32 to vector<8x128xf32>
    %166 = arith.cmpf ogt, %153, %165 : vector<8x128xf32>
    %cst_88 = arith.constant 1.000000e+00 : f32
    %cst_89 = arith.constant 0.000000e+00 : f32
    %167 = vector.broadcast %cst_88 : f32 to vector<8x128xf32>
    %168 = vector.broadcast %cst_89 : f32 to vector<8x128xf32>
    %169 = arith.select %166, %167, %168 : vector<8x128xi1>, vector<8x128xf32>
    %170 = arith.subf %164, %169 : vector<8x128xf32>
    %cst_90 = arith.constant 1.000000e+00 : f32
    %171 = vector.broadcast %cst_90 : f32 to vector<8x128xf32>
    %172 = arith.cmpf ogt, %170, %171 : vector<8x128xf32>
    %173 = arith.extui %172 : vector<8x128xi1> to vector<8x128xi32>
    %174 = arith.sitofp %173 : vector<8x128xi32> to vector<8x128xf32>
    %c2 = arith.constant 2 : index
    %c0_91 = arith.constant 0 : index
    %c0_92 = arith.constant 0 : index
    %175 = vector.load %arg6[%c2, %c0_91, %c0_92] : memref<8x8x128xf32, #tpu.memory_space<vmem>>, vector<1x8x128xf32>
    %176 = vector.shape_cast %175 : vector<1x8x128xf32> to vector<8x128xf32>
    %177 = vector.shape_cast %174 : vector<8x128xf32> to vector<1x8x128xf32>
    tpu.vector_store %arg6[%c2, %c0_91, %c0_92], %177 {strides = array<i32>} : memref<8x8x128xf32, #tpu.memory_space<vmem>>, vector<1x8x128xf32>,
    %c24_93 = arith.constant 24 : index
    %c0_94 = arith.constant 0 : index
    %178 = vector.load %arg7[%c24_93, %c0_94] : memref<64x128xf32, #tpu.memory_space<vmem>>, vector<8x128xf32>
    %cst_95 = arith.constant 0.899999976 : f32
    %179 = vector.broadcast %cst_95 : f32 to vector<8x128xf32>
    %180 = arith.mulf %179, %170 : vector<8x128xf32>
    %181 = arith.addf %180, %178 : vector<8x128xf32>
    %cst_96 = arith.constant 1.000000e+00 : f32
    %182 = vector.broadcast %cst_96 : f32 to vector<8x128xf32>
    %183 = arith.cmpf ogt, %170, %182 : vector<8x128xf32>
    %cst_97 = arith.constant 1.000000e+00 : f32
    %cst_98 = arith.constant 0.000000e+00 : f32
    %184 = vector.broadcast %cst_97 : f32 to vector<8x128xf32>
    %185 = vector.broadcast %cst_98 : f32 to vector<8x128xf32>
    %186 = arith.select %183, %184, %185 : vector<8x128xi1>, vector<8x128xf32>
    %187 = arith.subf %181, %186 : vector<8x128xf32>
    %cst_99 = arith.constant 1.000000e+00 : f32
    %188 = vector.broadcast %cst_99 : f32 to vector<8x128xf32>
    %189 = arith.cmpf ogt, %187, %188 : vector<8x128xf32>
    %190 = arith.extui %189 : vector<8x128xi1> to vector<8x128xi32>
    %191 = arith.sitofp %190 : vector<8x128xi32> to vector<8x128xf32>
    %c3 = arith.constant 3 : index
    %c0_100 = arith.constant 0 : index
    %c0_101 = arith.constant 0 : index
    %192 = vector.load %arg6[%c3, %c0_100, %c0_101] : memref<8x8x128xf32, #tpu.memory_space<vmem>>, vector<1x8x128xf32>
    %193 = vector.shape_cast %192 : vector<1x8x128xf32> to vector<8x128xf32>
    %194 = vector.shape_cast %191 : vector<8x128xf32> to vector<1x8x128xf32>
    tpu.vector_store %arg6[%c3, %c0_100, %c0_101], %194 {strides = array<i32>} : memref<8x8x128xf32, #tpu.memory_space<vmem>>, vector<1x8x128xf32>,
    %c32_102 = arith.constant 32 : index
    %c0_103 = arith.constant 0 : index
    %195 = vector.load %arg7[%c32_102, %c0_103] : memref<64x128xf32, #tpu.memory_space<vmem>>, vector<8x128xf32>
    %cst_104 = arith.constant 0.899999976 : f32
    %196 = vector.broadcast %cst_104 : f32 to vector<8x128xf32>
    %197 = arith.mulf %196, %187 : vector<8x128xf32>
    %198 = arith.addf %197, %195 : vector<8x128xf32>
    %cst_105 = arith.constant 1.000000e+00 : f32
    %199 = vector.broadcast %cst_105 : f32 to vector<8x128xf32>
    %200 = arith.cmpf ogt, %187, %199 : vector<8x128xf32>
    %cst_106 = arith.constant 1.000000e+00 : f32
    %cst_107 = arith.constant 0.000000e+00 : f32
    %201 = vector.broadcast %cst_106 : f32 to vector<8x128xf32>
    %202 = vector.broadcast %cst_107 : f32 to vector<8x128xf32>
    %203 = arith.select %200, %201, %202 : vector<8x128xi1>, vector<8x128xf32>
    %204 = arith.subf %198, %203 : vector<8x128xf32>
    %cst_108 = arith.constant 1.000000e+00 : f32
    %205 = vector.broadcast %cst_108 : f32 to vector<8x128xf32>
    %206 = arith.cmpf ogt, %204, %205 : vector<8x128xf32>
    %207 = arith.extui %206 : vector<8x128xi1> to vector<8x128xi32>
    %208 = arith.sitofp %207 : vector<8x128xi32> to vector<8x128xf32>
    %c4 = arith.constant 4 : index
    %c0_109 = arith.constant 0 : index
    %c0_110 = arith.constant 0 : index
    %209 = vector.load %arg6[%c4, %c0_109, %c0_110] : memref<8x8x128xf32, #tpu.memory_space<vmem>>, vector<1x8x128xf32>
    %210 = vector.shape_cast %209 : vector<1x8x128xf32> to vector<8x128xf32>
    %211 = vector.shape_cast %208 : vector<8x128xf32> to vector<1x8x128xf32>
    tpu.vector_store %arg6[%c4, %c0_109, %c0_110], %211 {strides = array<i32>} : memref<8x8x128xf32, #tpu.memory_space<vmem>>, vector<1x8x128xf32>,
    %c40_111 = arith.constant 40 : index
    %c0_112 = arith.constant 0 : index
    %212 = vector.load %arg7[%c40_111, %c0_112] : memref<64x128xf32, #tpu.memory_space<vmem>>, vector<8x128xf32>
    %cst_113 = arith.constant 0.899999976 : f32
    %213 = vector.broadcast %cst_113 : f32 to vector<8x128xf32>
    %214 = arith.mulf %213, %204 : vector<8x128xf32>
    %215 = arith.addf %214, %212 : vector<8x128xf32>
    %cst_114 = arith.constant 1.000000e+00 : f32
    %216 = vector.broadcast %cst_114 : f32 to vector<8x128xf32>
    %217 = arith.cmpf ogt, %204, %216 : vector<8x128xf32>
    %cst_115 = arith.constant 1.000000e+00 : f32
    %cst_116 = arith.constant 0.000000e+00 : f32
    %218 = vector.broadcast %cst_115 : f32 to vector<8x128xf32>
    %219 = vector.broadcast %cst_116 : f32 to vector<8x128xf32>
    %220 = arith.select %217, %218, %219 : vector<8x128xi1>, vector<8x128xf32>
    %221 = arith.subf %215, %220 : vector<8x128xf32>
    %cst_117 = arith.constant 1.000000e+00 : f32
    %222 = vector.broadcast %cst_117 : f32 to vector<8x128xf32>
    %223 = arith.cmpf ogt, %221, %222 : vector<8x128xf32>
    %224 = arith.extui %223 : vector<8x128xi1> to vector<8x128xi32>
    %225 = arith.sitofp %224 : vector<8x128xi32> to vector<8x128xf32>
    %c5 = arith.constant 5 : index
    %c0_118 = arith.constant 0 : index
    %c0_119 = arith.constant 0 : index
    %226 = vector.load %arg6[%c5, %c0_118, %c0_119] : memref<8x8x128xf32, #tpu.memory_space<vmem>>, vector<1x8x128xf32>
    %227 = vector.shape_cast %226 : vector<1x8x128xf32> to vector<8x128xf32>
    %228 = vector.shape_cast %225 : vector<8x128xf32> to vector<1x8x128xf32>
    tpu.vector_store %arg6[%c5, %c0_118, %c0_119], %228 {strides = array<i32>} : memref<8x8x128xf32, #tpu.memory_space<vmem>>, vector<1x8x128xf32>,
    %c48_120 = arith.constant 48 : index
    %c0_121 = arith.constant 0 : index
    %229 = vector.load %arg7[%c48_120, %c0_121] : memref<64x128xf32, #tpu.memory_space<vmem>>, vector<8x128xf32>
    %cst_122 = arith.constant 0.899999976 : f32
    %230 = vector.broadcast %cst_122 : f32 to vector<8x128xf32>
    %231 = arith.mulf %230, %221 : vector<8x128xf32>
    %232 = arith.addf %231, %229 : vector<8x128xf32>
    %cst_123 = arith.constant 1.000000e+00 : f32
    %233 = vector.broadcast %cst_123 : f32 to vector<8x128xf32>
    %234 = arith.cmpf ogt, %221, %233 : vector<8x128xf32>
    %cst_124 = arith.constant 1.000000e+00 : f32
    %cst_125 = arith.constant 0.000000e+00 : f32
    %235 = vector.broadcast %cst_124 : f32 to vector<8x128xf32>
    %236 = vector.broadcast %cst_125 : f32 to vector<8x128xf32>
    %237 = arith.select %234, %235, %236 : vector<8x128xi1>, vector<8x128xf32>
    %238 = arith.subf %232, %237 : vector<8x128xf32>
    %cst_126 = arith.constant 1.000000e+00 : f32
    %239 = vector.broadcast %cst_126 : f32 to vector<8x128xf32>
    %240 = arith.cmpf ogt, %238, %239 : vector<8x128xf32>
    %241 = arith.extui %240 : vector<8x128xi1> to vector<8x128xi32>
    %242 = arith.sitofp %241 : vector<8x128xi32> to vector<8x128xf32>
    %c6 = arith.constant 6 : index
    %c0_127 = arith.constant 0 : index
    %c0_128 = arith.constant 0 : index
    %243 = vector.load %arg6[%c6, %c0_127, %c0_128] : memref<8x8x128xf32, #tpu.memory_space<vmem>>, vector<1x8x128xf32>
    %244 = vector.shape_cast %243 : vector<1x8x128xf32> to vector<8x128xf32>
    %245 = vector.shape_cast %242 : vector<8x128xf32> to vector<1x8x128xf32>
    tpu.vector_store %arg6[%c6, %c0_127, %c0_128], %245 {strides = array<i32>} : memref<8x8x128xf32, #tpu.memory_space<vmem>>, vector<1x8x128xf32>,
    %c56_129 = arith.constant 56 : index
    %c0_130 = arith.constant 0 : index
    %246 = vector.load %arg7[%c56_129, %c0_130] : memref<64x128xf32, #tpu.memory_space<vmem>>, vector<8x128xf32>
    %cst_131 = arith.constant 0.899999976 : f32
    %247 = vector.broadcast %cst_131 : f32 to vector<8x128xf32>
    %248 = arith.mulf %247, %238 : vector<8x128xf32>
    %249 = arith.addf %248, %246 : vector<8x128xf32>
    %cst_132 = arith.constant 1.000000e+00 : f32
    %250 = vector.broadcast %cst_132 : f32 to vector<8x128xf32>
    %251 = arith.cmpf ogt, %238, %250 : vector<8x128xf32>
    %cst_133 = arith.constant 1.000000e+00 : f32
    %cst_134 = arith.constant 0.000000e+00 : f32
    %252 = vector.broadcast %cst_133 : f32 to vector<8x128xf32>
    %253 = vector.broadcast %cst_134 : f32 to vector<8x128xf32>
    %254 = arith.select %251, %252, %253 : vector<8x128xi1>, vector<8x128xf32>
    %255 = arith.subf %249, %254 : vector<8x128xf32>
    %cst_135 = arith.constant 1.000000e+00 : f32
    %256 = vector.broadcast %cst_135 : f32 to vector<8x128xf32>
    %257 = arith.cmpf ogt, %255, %256 : vector<8x128xf32>
    %258 = arith.extui %257 : vector<8x128xi1> to vector<8x128xi32>
    %259 = arith.sitofp %258 : vector<8x128xi32> to vector<8x128xf32>
    %c7 = arith.constant 7 : index
    %c0_136 = arith.constant 0 : index
    %c0_137 = arith.constant 0 : index
    %260 = vector.load %arg6[%c7, %c0_136, %c0_137] : memref<8x8x128xf32, #tpu.memory_space<vmem>>, vector<1x8x128xf32>
    %261 = vector.shape_cast %260 : vector<1x8x128xf32> to vector<8x128xf32>
    %262 = vector.shape_cast %259 : vector<8x128xf32> to vector<1x8x128xf32>
    tpu.vector_store %arg6[%c7, %c0_136, %c0_137], %262 {strides = array<i32>} : memref<8x8x128xf32, #tpu.memory_space<vmem>>, vector<1x8x128xf32>,
    return
  }
  func.func @transform_0(%arg0: i32) -> (i32, i32) {
    %c0_i32 = arith.constant 0 : i32
    %c0_i32_0 = arith.constant 0 : i32
    return %arg0, %c0_i32 : i32, i32
  }
  func.func @transform_1(%arg0: i32) -> (i32, i32) {
    %c0_i32 = arith.constant 0 : i32
    %c0_i32_0 = arith.constant 0 : i32
    %c0_i32_1 = arith.constant 0 : i32
    return %c0_i32, %c0_i32_0 : i32, i32
  }
  func.func @transform_2(%arg0: i32) -> (i32, i32) {
    %c0_i32 = arith.constant 0 : i32
    %c0_i32_0 = arith.constant 0 : i32
    %c0_i32_1 = arith.constant 0 : i32
    return %c0_i32, %c0_i32_0 : i32, i32
  }
  func.func @transform_3(%arg0: i32) -> (i32, i32) {
    %c0_i32 = arith.constant 0 : i32
    %c0_i32_0 = arith.constant 0 : i32
    %c0_i32_1 = arith.constant 0 : i32
    return %c0_i32, %c0_i32_0 : i32, i32
  }
  func.func @transform_4(%arg0: i32) -> (i32, i32) {
    %c0_i32 = arith.constant 0 : i32
    %c0_i32_0 = arith.constant 0 : i32
    %c0_i32_1 = arith.constant 0 : i32
    return %c0_i32, %c0_i32_0 : i32, i32
  }
  func.func @transform_5(%arg0: i32) -> (i32, i32, i32) {
    %c0_i32 = arith.constant 0 : i32
    %c0_i32_0 = arith.constant 0 : i32
    %c0_i32_1 = arith.constant 0 : i32
    return %c0_i32, %arg0, %c0_i32_0 : i32, i32, i32
  }
}

</mosaic_0001>

<llo_original>
// kernel: snn_forward.1
$region0: #{snn_forward.1}
  #allocation0 [shape = 'u32[]', space=smem, size = 0x4, offset = 0x4, fixed_abs, tag = 'smem constant byte address 0x4 - core index']
  #allocation1 [shape = 'u32[144,128]{1,0:T(1,128)}', space=vmem, size = 0x12000, scoped, tag = 'internal scratch']
  #allocation2 [shape = 'f32[64,128]{1,0:T(8,128)}', space=vmem, size = 0x8000, scoped, tag = 'scratch operand']
  %s0 = inlined_call_operand.hbm [shape: f32[8,64], index: 0, kind: input, shape index: {}]
  %s1 = inlined_call_operand.hbm [shape: f32[64,128], index: 1, kind: input, shape index: {}]
  %s2 = inlined_call_operand.vmem [shape: f32[1,128], index: 2, kind: input, shape index: {}]
  %s3 = inlined_call_operand.hbm [shape: f32[128,128], index: 3, kind: input, shape index: {}]
  %s4 = inlined_call_operand.vmem [shape: f32[1,128], index: 4, kind: input, shape index: {}]
  %s5 = inlined_call_operand.hbm [shape: f32[8,8,128], index: 5, kind: output, shape index: {}]
  %s6 = sld [smem:[#allocation0]]
  $region42: #{snn_forward.1} parent=0
    _
  %s8 = ssub.s32 1, %s6
  %s9 = scalar_select 0, %s8, %s6
  $region1: #{snn_forward.1} parent=0
    #allocation3 [shape = 'u8[4096]{0}', space=vmem, size = 0x1000, scoped, tag = 'input window, operand 0, single buffered']
    #allocation4 [shape = 's32[1]{0}', space=sflag, size = 0x4, scoped, tag = 'scoped memory for snn_forward.1']
    #allocation5 [shape = 's32[1]{0}', space=sflag, size = 0x4, scoped, tag = 'scoped memory for snn_forward.1']
    #allocation6 [shape = 'u8[32768]{0}', space=vmem, size = 0x8000, scoped, tag = 'input window, operand 1, single buffered']
    #allocation7 [shape = 's32[1]{0}', space=sflag, size = 0x4, scoped, tag = 'scoped memory for snn_forward.1']
    #allocation8 [shape = 'u8[65536]{0}', space=vmem, size = 0x10000, scoped, tag = 'input window, operand 3, single buffered']
    #allocation9 [shape = 'u8[32768]{0}', space=vmem, size = 0x8000, scoped, tag = 'output window, operand 0, single buffered']
    %10 = vsyncpa [#allocation4], 0
    %11 = vsyncpa [#allocation7], 0
    %12 = vsyncpa [#allocation5], 0
    // Predicated region
    $region2: #{snn_forward.1} parent=1 // pred_check
      _
    $region3: #{snn_forward.1} parent=1 // pred_check_branch
      %14 = sbr.rel (0) target = $region5
    $region4: #{snn_forward.1} parent=1 // pred_region
      %s16 = ssub.s32 128, 128
      %17 = vsyncadd [#allocation4], %s16
      %s19 = sshll.u32 [#allocation3], 4
      %s20 = int_to_ptr.vmem [resolvable:$true] %s19
      %22 = dma.hbm_to_vmem [thread:$0]  %s0, 128, %s20, [#allocation4]
    $region5: #{snn_forward.1} parent=1 // pred_fallthru
      _
    // Predicated region
    $region6: #{snn_forward.1} parent=1 // pred_check
      _
    $region7: #{snn_forward.1} parent=1 // pred_check_branch
      %24 = sbr.rel (0) target = $region9
    $region8: #{snn_forward.1} parent=1 // pred_region
      %s26 = ssub.s32 1024, 1024
      %27 = vsyncadd [#allocation7], %s26
      %s28 = sshll.u32 [#allocation6], 4
      %s29 = int_to_ptr.vmem [resolvable:$true] %s28
      %34 = dma.hbm_to_vmem [thread:$0]  %s1, 1024, %s29, [#allocation7], 128, 128, 8
    $region9: #{snn_forward.1} parent=1 // pred_fallthru
      _
    // Predicated region
    $region10: #{snn_forward.1} parent=1 // pred_check
      _
    $region11: #{snn_forward.1} parent=1 // pred_check_branch
      %36 = sbr.rel (0) target = $region13
    $region12: #{snn_forward.1} parent=1 // pred_region
      _
    $region13: #{snn_forward.1} parent=1 // pred_fallthru
      _
    // Predicated region
    $region14: #{snn_forward.1} parent=1 // pred_check
      _
    $region15: #{snn_forward.1} parent=1 // pred_check_branch
      %38 = sbr.rel (0) target = $region17
    $region16: #{snn_forward.1} parent=1 // pred_region
      %s40 = ssub.s32 2048, 2048
      %41 = vsyncadd [#allocation7], %s40
      %s42 = sshll.u32 [#allocation8], 4
      %s43 = int_to_ptr.vmem [resolvable:$true] %s42
      %48 = dma.hbm_to_vmem [thread:$0]  %s3, 2048, %s43, [#allocation7], 128, 128, 8
    $region17: #{snn_forward.1} parent=1 // pred_fallthru
      _
    // Predicated region
    $region18: #{snn_forward.1} parent=1 // pred_check
      _
    $region19: #{snn_forward.1} parent=1 // pred_check_branch
      %50 = sbr.rel (0) target = $region21
    $region20: #{snn_forward.1} parent=1 // pred_region
      _
    $region21: #{snn_forward.1} parent=1 // pred_fallthru
      _
    // Predicated region
    $region22: #{snn_forward.1} parent=1 // pred_check
      _
    $region23: #{snn_forward.1} parent=1 // pred_check_branch
      %52 = sbr.rel (0) target = $region25
    $region24: #{snn_forward.1} parent=1 // pred_region
      %53 = dma.done [#allocation4], 128
    $region25: #{snn_forward.1} parent=1 // pred_fallthru
      _
    // Predicated region
    $region26: #{snn_forward.1} parent=1 // pred_check
      _
    $region27: #{snn_forward.1} parent=1 // pred_check_branch
      %55 = sbr.rel (0) target = $region29
    $region28: #{snn_forward.1} parent=1 // pred_region
      %56 = dma.done [#allocation7], 1024
    $region29: #{snn_forward.1} parent=1 // pred_fallthru
      _
    // Predicated region
    $region30: #{snn_forward.1} parent=1 // pred_check
      _
    $region31: #{snn_forward.1} parent=1 // pred_check_branch
      %58 = sbr.rel (0) target = $region33
    $region32: #{snn_forward.1} parent=1 // pred_region
      %59 = dma.done [#allocation7], 2048
    $region33: #{snn_forward.1} parent=1 // pred_fallthru
      _
    %v60 = vld [vmem:[#allocation3] sm:$0xff]
    %v61 = vld [vmem:[#allocation6] sm:$0xff]
    %v62 = vld [vmem:[#allocation6 + $0x8] sm:$0xff]
    %v63 = vld [vmem:[#allocation6 + $0x10] sm:$0xff]
    %v64 = vld [vmem:[#allocation6 + $0x18] sm:$0xff]
    %v65 = vld [vmem:[#allocation6 + $0x20] sm:$0xff]
    %v66 = vld [vmem:[#allocation6 + $0x28] sm:$0xff]
    %v67 = vld [vmem:[#allocation6 + $0x30] sm:$0xff]
    %v68 = vld [vmem:[#allocation6 + $0x38] sm:$0xff]
    %v69 = vld [vmem:[%s2] sm:$0x1]
    %v71 = vlaneseq
    %v72 = vshrl.u32 %v71, 7
    %v73 = vsub.s32 0, %v72
    %v74 = vrot.slane %v69, %v73
    %vm76 = vcmask 523264
    %v78 = vsel %vm76, %v60, 0
    %80 = vmatprep.subr.mxu0 0.0
    %81 = vmatpush1.msra.mxu0 %v61
    %82 = vmatprep.subr.mxu0 0.0
    %83 = vmatpush1.msra.mxu0 %v62
    %84 = vmatprep.subr.mxu0 0.0
    %85 = vmatpush1.msra.mxu0 %v63
    %86 = vmatprep.subr.mxu0 0.0
    %87 = vmatpush1.msra.mxu0 %v64
    %88 = vmatprep.subr.mxu0 0.0
    %89 = vmatpush1.msra.mxu0 %v65
    %90 = vmatprep.subr.mxu0 0.0
    %91 = vmatpush1.msra.mxu0 %v66
    %92 = vmatprep.subr.mxu0 0.0
    %93 = vmatpush1.msra.mxu0 %v67
    %94 = vmatprep.subr.mxu0 0.0
    %95 = vmatpush1.msra.mxu0 %v68
    %96 = vmatprep.subr.mxu0 0.0
    %97 = vmatpush1.msra.mxu0 0.0
    %98 = vmatprep.subr.mxu0 0.0
    %99 = vmatpush1.msra.mxu0 0.0
    %100 = vmatprep.subr.mxu0 0.0
    %101 = vmatpush1.msra.mxu0 0.0
    %102 = vmatprep.subr.mxu0 0.0
    %103 = vmatpush1.msra.mxu0 0.0
    %104 = vmatprep.subr.mxu0 0.0
    %105 = vmatpush1.msra.mxu0 0.0
    %106 = vmatprep.subr.mxu0 0.0
    %107 = vmatpush1.msra.mxu0 0.0
    %108 = vmatprep.subr.mxu0 0.0
    %109 = vmatpush1.msra.mxu0 0.0
    %110 = vmatprep.subr.mxu0 0.0
    %111 = vmatpush1.msra.mxu0 0.0
    %112 = vmatprep.subr.mxu0 0.0
    %113 = vmatpush1.msra.mxu0 0.0
    %114 = vmatprep.subr.mxu0 0.0
    %115 = vmatpush1.msra.mxu0 0.0
    %116 = vmatprep.subr.mxu0 0.0
    %117 = vmatpush1.msra.mxu0 0.0
    %118 = vmatprep.subr.mxu0 0.0
    %119 = vmatpush1.msra.mxu0 0.0
    %120 = vmatprep.subr.mxu0 0.0
    %121 = vmatpush1.msra.mxu0 0.0
    %122 = vmatprep.subr.mxu0 0.0
    %123 = vmatpush1.msra.mxu0 0.0
    %124 = vmatprep.subr.mxu0 0.0
    %125 = vmatpush1.msra.mxu0 0.0
    %126 = vmatprep.subr.mxu0 0.0
    %127 = vmatpush1.msra.mxu0 0.0
    %128 = vmatprep.subr.mxu0 0.0
    %129 = vmatpush1.msra.mxu0 0.0
    %130 = vmatprep.subr.mxu0 0.0
    %131 = vmatpush1.msra.mxu0 0.0
    %132 = vmatprep.subr.mxu0 0.0
    %133 = vmatpush1.msra.mxu0 0.0
    %134 = vmatprep.subr.mxu0 0.0
    %135 = vmatpush1.msra.mxu0 0.0
    %136 = vmatprep.subr.mxu0 0.0
    %137 = vmatpush1.msra.mxu0 0.0
    %138 = vmatprep.subr.mxu0 0.0
    %139 = vmatpush1.msra.mxu0 0.0
    %140 = vmatprep.subr.mxu0 0.0
    %141 = vmatpush1.msra.mxu0 0.0
    %142 = vmatprep.subr.mxu0 0.0
    %143 = vmatpush1.msra.mxu0 0.0
    %144 = vmatprep.mubr.f32.mxu0 0.0
    %145 = vmatmul.mubr.f32.gmra.mrb[0].mxu0 %v78
    %v146 = vpop.f32.mrb[0].mxu0
    %v147 = vadd.f32 %v74, %v146
    %v148 = vpop.f32.mrb[0].mxu0
    %149 = vdwg.mxu0
    %v150 = vadd.f32 %v147, 0.0
    %vm151 = vcmp.gt.f32.partialorder 0.0, 1.0
    %v152 = vsel %vm151, 1.0, 0.0
    %v153 = vsub.f32 %v150, %v152
    %vm154 = vcmp.gt.f32.partialorder %v153, 1.0
    %v155 = vsel %vm154, 1, 0
    %v156 = vcvt.s32.f32 %v155
    %157 = vst [vmem:[#allocation2] sm:$0xff] %v156
    %v158 = vmul.f32 %v153, 0.9
    %v159 = vadd.f32 %v158, %v147
    %v160 = vsel %vm154, 1.0, 0.0
    %v161 = vsub.f32 %v159, %v160
    %vm162 = vcmp.gt.f32.partialorder %v161, 1.0
    %v163 = vsel %vm162, 1, 0
    %v164 = vcvt.s32.f32 %v163
    %165 = vst [vmem:[#allocation2 + $0x8] sm:$0xff] %v164
    %v166 = vmul.f32 %v161, 0.9
    %v167 = vadd.f32 %v166, %v147
    %v168 = vsel %vm162, 1.0, 0.0
    %v169 = vsub.f32 %v167, %v168
    %vm170 = vcmp.gt.f32.partialorder %v169, 1.0
    %v171 = vsel %vm170, 1, 0
    %v172 = vcvt.s32.f32 %v171
    %173 = vst [vmem:[#allocation2 + $0x10] sm:$0xff] %v172
    %v174 = vmul.f32 %v169, 0.9
    %v175 = vadd.f32 %v174, %v147
    %v176 = vsel %vm170, 1.0, 0.0
    %v177 = vsub.f32 %v175, %v176
    %vm178 = vcmp.gt.f32.partialorder %v177, 1.0
    %v179 = vsel %vm178, 1, 0
    %v180 = vcvt.s32.f32 %v179
    %181 = vst [vmem:[#allocation2 + $0x18] sm:$0xff] %v180
    %v182 = vmul.f32 %v177, 0.9
    %v183 = vadd.f32 %v182, %v147
    %v184 = vsel %vm178, 1.0, 0.0
    %v185 = vsub.f32 %v183, %v184
    %vm186 = vcmp.gt.f32.partialorder %v185, 1.0
    %v187 = vsel %vm186, 1, 0
    %v188 = vcvt.s32.f32 %v187
    %189 = vst [vmem:[#allocation2 + $0x20] sm:$0xff] %v188
    %v190 = vmul.f32 %v185, 0.9
    %v191 = vadd.f32 %v190, %v147
    %v192 = vsel %vm186, 1.0, 0.0
    %v193 = vsub.f32 %v191, %v192
    %vm194 = vcmp.gt.f32.partialorder %v193, 1.0
    %v195 = vsel %vm194, 1, 0
    %v196 = vcvt.s32.f32 %v195
    %197 = vst [vmem:[#allocation2 + $0x28] sm:$0xff] %v196
    %v198 = vmul.f32 %v193, 0.9
    %v199 = vadd.f32 %v198, %v147
    %v200 = vsel %vm194, 1.0, 0.0
    %v201 = vsub.f32 %v199, %v200
    %vm202 = vcmp.gt.f32.partialorder %v201, 1.0
    %v203 = vsel %vm202, 1, 0
    %v204 = vcvt.s32.f32 %v203
    %205 = vst [vmem:[#allocation2 + $0x30] sm:$0xff] %v204
    %v206 = vmul.f32 %v201, 0.9
    %v207 = vadd.f32 %v206, %v147
    %v208 = vsel %vm202, 1.0, 0.0
    %v209 = vsub.f32 %v207, %v208
    %vm210 = vcmp.gt.f32.partialorder %v209, 1.0
    %v211 = vsel %vm210, 1, 0
    %v212 = vcvt.s32.f32 %v211
    %213 = vst [vmem:[#allocation2 + $0x38] sm:$0xff] %v212
    %v214 = vld [vmem:[#allocation2] sm:$0xff]
    %v215 = vld [vmem:[#allocation2 + $0x8] sm:$0xff]
    %v216 = vld [vmem:[#allocation2 + $0x10] sm:$0xff]
    %v217 = vld [vmem:[#allocation2 + $0x18] sm:$0xff]
    %v218 = vld [vmem:[#allocation2 + $0x20] sm:$0xff]
    %v219 = vld [vmem:[#allocation2 + $0x28] sm:$0xff]
    %v220 = vld [vmem:[#allocation2 + $0x30] sm:$0xff]
    %v221 = vld [vmem:[#allocation2 + $0x38] sm:$0xff]
    %v222 = vld [vmem:[#allocation8] sm:$0xff]
    %v223 = vld [vmem:[#allocation8 + $0x8] sm:$0xff]
    %v224 = vld [vmem:[#allocation8 + $0x10] sm:$0xff]
    %v225 = vld [vmem:[#allocation8 + $0x18] sm:$0xff]
    %v226 = vld [vmem:[#allocation8 + $0x20] sm:$0xff]
    %v227 = vld [vmem:[#allocation8 + $0x28] sm:$0xff]
    %v228 = vld [vmem:[#allocation8 + $0x30] sm:$0xff]
    %v229 = vld [vmem:[#allocation8 + $0x38] sm:$0xff]
    %v230 = vld [vmem:[#allocation8 + $0x40] sm:$0xff]
    %v231 = vld [vmem:[#allocation8 + $0x48] sm:$0xff]
    %v232 = vld [vmem:[#allocation8 + $0x50] sm:$0xff]
    %v233 = vld [vmem:[#allocation8 + $0x58] sm:$0xff]
    %v234 = vld [vmem:[#allocation8 + $0x60] sm:$0xff]
    %v235 = vld [vmem:[#allocation8 + $0x68] sm:$0xff]
    %v236 = vld [vmem:[#allocation8 + $0x70] sm:$0xff]
    %v237 = vld [vmem:[#allocation8 + $0x78] sm:$0xff]
    %v238 = vld [vmem:[%s4] sm:$0x1]
    %v240 = vlaneseq
    %v241 = vshrl.u32 %v240, 7
    %v242 = vsub.s32 0, %v241
    %v243 = vrot.slane %v238, %v242
    %245 = vmatprep.subr.mxu0 0.0
    %246 = vmatpush1.msra.mxu0 %v222
    %247 = vmatprep.subr.mxu0 0.0
    %248 = vmatpush1.msra.mxu0 %v223
    %249 = vmatprep.subr.mxu0 0.0
    %250 = vmatpush1.msra.mxu0 %v224
    %251 = vmatprep.subr.mxu0 0.0
    %252 = vmatpush1.msra.mxu0 %v225
    %253 = vmatprep.subr.mxu0 0.0
    %254 = vmatpush1.msra.mxu0 %v226
    %255 = vmatprep.subr.mxu0 0.0
    %256 = vmatpush1.msra.mxu0 %v227
    %257 = vmatprep.subr.mxu0 0.0
    %258 = vmatpush1.msra.mxu0 %v228
    %259 = vmatprep.subr.mxu0 0.0
    %260 = vmatpush1.msra.mxu0 %v229
    %261 = vmatprep.subr.mxu0 0.0
    %262 = vmatpush1.msra.mxu0 %v230
    %263 = vmatprep.subr.mxu0 0.0
    %264 = vmatpush1.msra.mxu0 %v231
    %265 = vmatprep.subr.mxu0 0.0
    %266 = vmatpush1.msra.mxu0 %v232
    %267 = vmatprep.subr.mxu0 0.0
    %268 = vmatpush1.msra.mxu0 %v233
    %269 = vmatprep.subr.mxu0 0.0
    %270 = vmatpush1.msra.mxu0 %v234
    %271 = vmatprep.subr.mxu0 0.0
    %272 = vmatpush1.msra.mxu0 %v235
    %273 = vmatprep.subr.mxu0 0.0
    %274 = vmatpush1.msra.mxu0 %v236
    %275 = vmatprep.subr.mxu0 0.0
    %276 = vmatpush1.msra.mxu0 %v237
    %277 = vmatprep.subr.mxu0 0.0
    %278 = vmatpush1.msra.mxu0 0.0
    %279 = vmatprep.subr.mxu0 0.0
    %280 = vmatpush1.msra.mxu0 0.0
    %281 = vmatprep.subr.mxu0 0.0
    %282 = vmatpush1.msra.mxu0 0.0
    %283 = vmatprep.subr.mxu0 0.0
    %284 = vmatpush1.msra.mxu0 0.0
    %285 = vmatprep.subr.mxu0 0.0
    %286 = vmatpush1.msra.mxu0 0.0
    %287 = vmatprep.subr.mxu0 0.0
    %288 = vmatpush1.msra.mxu0 0.0
    %289 = vmatprep.subr.mxu0 0.0
    %290 = vmatpush1.msra.mxu0 0.0
    %291 = vmatprep.subr.mxu0 0.0
    %292 = vmatpush1.msra.mxu0 0.0
    %293 = vmatprep.subr.mxu0 0.0
    %294 = vmatpush1.msra.mxu0 0.0
    %295 = vmatprep.subr.mxu0 0.0
    %296 = vmatpush1.msra.mxu0 0.0
    %297 = vmatprep.subr.mxu0 0.0
    %298 = vmatpush1.msra.mxu0 0.0
    %299 = vmatprep.subr.mxu0 0.0
    %300 = vmatpush1.msra.mxu0 0.0
    %301 = vmatprep.subr.mxu0 0.0
    %302 = vmatpush1.msra.mxu0 0.0
    %303 = vmatprep.subr.mxu0 0.0
    %304 = vmatpush1.msra.mxu0 0.0
    %305 = vmatprep.subr.mxu0 0.0
    %306 = vmatpush1.msra.mxu0 0.0
    %307 = vmatprep.subr.mxu0 0.0
    %308 = vmatpush1.msra.mxu0 0.0
    %309 = vmatprep.mubr.f32.mxu0 0.0
    %310 = vmatmul.mubr.f32.gmra.mrb[0].mxu0 %v214
    %v311 = vpop.f32.mrb[0].mxu0
    %v312 = vadd.f32 %v243, %v311
    %v313 = vpop.f32.mrb[0].mxu0
    %314 = vmatprep.mubr.f32.mxu0 0.0
    %315 = vmatmul.mubr.f32.gmra.mrb[0].mxu0 %v215
    %v316 = vpop.f32.mrb[0].mxu0
    %v317 = vadd.f32 %v243, %v316
    %v318 = vpop.f32.mrb[0].mxu0
    %319 = vmatprep.mubr.f32.mxu0 0.0
    %320 = vmatmul.mubr.f32.gmra.mrb[0].mxu0 %v216
    %v321 = vpop.f32.mrb[0].mxu0
    %v322 = vadd.f32 %v243, %v321
    %v323 = vpop.f32.mrb[0].mxu0
    %324 = vmatprep.mubr.f32.mxu0 0.0
    %325 = vmatmul.mubr.f32.gmra.mrb[0].mxu0 %v217
    %v326 = vpop.f32.mrb[0].mxu0
    %v327 = vadd.f32 %v243, %v326
    %v328 = vpop.f32.mrb[0].mxu0
    %329 = vmatprep.mubr.f32.mxu0 0.0
    %330 = vmatmul.mubr.f32.gmra.mrb[0].mxu0 %v218
    %v331 = vpop.f32.mrb[0].mxu0
    %v332 = vadd.f32 %v243, %v331
    %v333 = vpop.f32.mrb[0].mxu0
    %334 = vmatprep.mubr.f32.mxu0 0.0
    %335 = vmatmul.mubr.f32.gmra.mrb[0].mxu0 %v219
    %v336 = vpop.f32.mrb[0].mxu0
    %v337 = vadd.f32 %v243, %v336
    %v338 = vpop.f32.mrb[0].mxu0
    %339 = vmatprep.mubr.f32.mxu0 0.0
    %340 = vmatmul.mubr.f32.gmra.mrb[0].mxu0 %v220
    %v341 = vpop.f32.mrb[0].mxu0
    %v342 = vadd.f32 %v243, %v341
    %v343 = vpop.f32.mrb[0].mxu0
    %344 = vmatprep.mubr.f32.mxu0 0.0
    %345 = vmatmul.mubr.f32.gmra.mrb[0].mxu0 %v221
    %v346 = vpop.f32.mrb[0].mxu0
    %v347 = vadd.f32 %v243, %v346
    %v348 = vpop.f32.mrb[0].mxu0
    %349 = vdwg.mxu0
    %350 = vst [vmem:[#allocation2] sm:$0xff] %v312
    %351 = vst [vmem:[#allocation2 + $0x8] sm:$0xff] %v317
    %352 = vst [vmem:[#allocation2 + $0x10] sm:$0xff] %v322
    %353 = vst [vmem:[#allocation2 + $0x18] sm:$0xff] %v327
    %354 = vst [vmem:[#allocation2 + $0x20] sm:$0xff] %v332
    %355 = vst [vmem:[#allocation2 + $0x28] sm:$0xff] %v337
    %356 = vst [vmem:[#allocation2 + $0x30] sm:$0xff] %v342
    %357 = vst [vmem:[#allocation2 + $0x38] sm:$0xff] %v347
    %v358 = vld [vmem:[#allocation2] sm:$0xff]
    %v359 = vadd.f32 %v358, 0.0
    %v360 = vsub.f32 %v359, %v152
    %vm361 = vcmp.gt.f32.partialorder %v360, 1.0
    %v362 = vsel %vm361, 1, 0
    %v363 = vcvt.s32.f32 %v362
    %364 = vst [vmem:[#allocation9] sm:$0xff] %v363
    %v365 = vld [vmem:[#allocation2 + $0x8] sm:$0xff]
    %v366 = vmul.f32 %v360, 0.9
    %v367 = vadd.f32 %v366, %v365
    %v368 = vsel %vm361, 1.0, 0.0
    %v369 = vsub.f32 %v367, %v368
    %vm370 = vcmp.gt.f32.partialorder %v369, 1.0
    %v371 = vsel %vm370, 1, 0
    %v372 = vcvt.s32.f32 %v371
    %s373 = scalar_lea.vmem [#allocation9], 8
    %374 = vst [vmem:[%s373] sm:$0xff] %v372
    %v375 = vld [vmem:[#allocation2 + $0x10] sm:$0xff]
    %v376 = vmul.f32 %v369, 0.9
    %v377 = vadd.f32 %v376, %v375
    %v378 = vsel %vm370, 1.0, 0.0
    %v379 = vsub.f32 %v377, %v378
    %vm380 = vcmp.gt.f32.partialorder %v379, 1.0
    %v381 = vsel %vm380, 1, 0
    %v382 = vcvt.s32.f32 %v381
    %s383 = scalar_lea.vmem [#allocation9], 16
    %384 = vst [vmem:[%s383] sm:$0xff] %v382
    %v385 = vld [vmem:[#allocation2 + $0x18] sm:$0xff]
    %v386 = vmul.f32 %v379, 0.9
    %v387 = vadd.f32 %v386, %v385
    %v388 = vsel %vm380, 1.0, 0.0
    %v389 = vsub.f32 %v387, %v388
    %vm390 = vcmp.gt.f32.partialorder %v389, 1.0
    %v391 = vsel %vm390, 1, 0
    %v392 = vcvt.s32.f32 %v391
    %s393 = scalar_lea.vmem [#allocation9], 24
    %394 = vst [vmem:[%s393] sm:$0xff] %v392
    %v395 = vld [vmem:[#allocation2 + $0x20] sm:$0xff]
    %v396 = vmul.f32 %v389, 0.9
    %v397 = vadd.f32 %v396, %v395
    %v398 = vsel %vm390, 1.0, 0.0
    %v399 = vsub.f32 %v397, %v398
    %vm400 = vcmp.gt.f32.partialorder %v399, 1.0
    %v401 = vsel %vm400, 1, 0
    %v402 = vcvt.s32.f32 %v401
    %s403 = scalar_lea.vmem [#allocation9], 32
    %404 = vst [vmem:[%s403] sm:$0xff] %v402
    %v405 = vld [vmem:[#allocation2 + $0x28] sm:$0xff]
    %v406 = vmul.f32 %v399, 0.9
    %v407 = vadd.f32 %v406, %v405
    %v408 = vsel %vm400, 1.0, 0.0
    %v409 = vsub.f32 %v407, %v408
    %vm410 = vcmp.gt.f32.partialorder %v409, 1.0
    %v411 = vsel %vm410, 1, 0
    %v412 = vcvt.s32.f32 %v411
    %s413 = scalar_lea.vmem [#allocation9], 40
    %414 = vst [vmem:[%s413] sm:$0xff] %v412
    %v415 = vld [vmem:[#allocation2 + $0x30] sm:$0xff]
    %v416 = vmul.f32 %v409, 0.9
    %v417 = vadd.f32 %v416, %v415
    %v418 = vsel %vm410, 1.0, 0.0
    %v419 = vsub.f32 %v417, %v418
    %vm420 = vcmp.gt.f32.partialorder %v419, 1.0
    %v421 = vsel %vm420, 1, 0
    %v422 = vcvt.s32.f32 %v421
    %s423 = scalar_lea.vmem [#allocation9], 48
    %424 = vst [vmem:[%s423] sm:$0xff] %v422
    %v425 = vld [vmem:[#allocation2 + $0x38] sm:$0xff]
    %v426 = vmul.f32 %v419, 0.9
    %v427 = vadd.f32 %v426, %v425
    %v428 = vsel %vm420, 1.0, 0.0
    %v429 = vsub.f32 %v427, %v428
    %vm430 = vcmp.gt.f32.partialorder %v429, 1.0
    %v431 = vsel %vm430, 1, 0
    %v432 = vcvt.s32.f32 %v431
    %s433 = scalar_lea.vmem [#allocation9], 56
    %434 = vst [vmem:[%s433] sm:$0xff] %v432
    // Predicated region
    $region34: #{snn_forward.1} parent=1 // pred_check
      _
    $region35: #{snn_forward.1} parent=1 // pred_check_branch
      %436 = sbr.rel (0) target = $region37
    $region36: #{snn_forward.1} parent=1 // pred_region
      %s438 = ssub.s32 1024, 1024
      %439 = vsyncadd [#allocation5], %s438
      %s440 = sshll.u32 [#allocation9], 4
      %s441 = int_to_ptr.vmem [resolvable:$true] %s440
      %446 = dma.vmem_to_hbm [thread:$0]  %s441, 1024, %s5, [#allocation5], 128, 128, 8
    $region37: #{snn_forward.1} parent=1 // pred_fallthru
      _
    // Predicated region
    $region38: #{snn_forward.1} parent=1 // pred_check
      _
    $region39: #{snn_forward.1} parent=1 // pred_check_branch
      %448 = sbr.rel (0) target = $region41
    $region40: #{snn_forward.1} parent=1 // pred_region
      %449 = dma.done [#allocation5], 1024
    $region41: #{snn_forward.1} parent=1 // pred_fallthru
      _
    %450 = vsyncpa [#allocation4], 1
    %451 = vsyncpa [#allocation7], 1
    %452 = vsyncpa [#allocation5], 1

</llo_original>
